<compile_context>
chip_gen: v6e
topology: v6e:2x2x1
jax: 0.10.0
libtpu: 0.0.40
codegen_flags: <defaults>
</compile_context>

<pallas_src>
import jax
import jax.numpy as jnp
from jax.experimental import pallas as pl
from jax.experimental.pallas import tpu as pltpu

LN_EPS = 1e-5  # torch.nn.LayerNorm default eps


def _layernorm_affine(x, gamma_eff, beta_eff):
    # One-pass stats: var = E[x^2] - mean^2 (halves XLU reduction passes).
    # gamma_eff/beta_eff already have the FiLM scale/shift folded in.
    mean = jnp.mean(x, axis=-1, keepdims=True)
    mean_sq = jnp.mean(x * x, axis=-1, keepdims=True)
    var = jnp.maximum(mean_sq - mean * mean, 0.0)
    inv = jax.lax.rsqrt(var + LN_EPS)          # EUP
    return (x - mean) * inv * gamma_eff + beta_eff


def _silu(x):
    return x * jax.nn.sigmoid(x)


def dense_res_block_kernel(x_ref, film_ref, pvec_ref, w1_ref, w2_ref, o_ref):
    # x_ref/o_ref: (TT, C)   film_ref: (2, C)   pvec_ref: (8, C)   w*_ref: (C, C)
    h = x_ref[...].astype(jnp.float32)                       # (TT, C)

    film = film_ref[...].astype(jnp.float32)                 # (2, C)
    scale = film[0:1, :]                                     # (1, C)
    shift = film[1:2, :]                                     # (1, C)

    pv = pvec_ref[...].astype(jnp.float32)                   # (8, C)
    g1, be1, b1 = pv[0:1, :], pv[1:2, :], pv[2:3, :]
    g2, be2, b2 = pv[3:4, :], pv[4:5, :], pv[5:6, :]

    # Fold FiLM into the LN affine once per grid step (per-(1,C) vectors).
    g1_eff = g1 * scale
    b1_eff = be1 * scale + shift
    g2_eff = g2 * scale
    b2_eff = be2 * scale + shift

    w1 = w1_ref[...]                                         # (C, C) native dtype
    w2 = w2_ref[...]

    # --- sub-block 1: LN(+FiLM) -> SiLU -> Linear ---
    h = _layernorm_affine(h, g1_eff, b1_eff)
    h = _silu(h)
    h = jnp.dot(h.astype(w1.dtype), w1, preferred_element_type=jnp.float32) + b1

    # --- sub-block 2: LN(+FiLM) -> SiLU -> Linear ---
    h = _layernorm_affine(h, g2_eff, b2_eff)
    h = _silu(h)
    h = jnp.dot(h.astype(w2.dtype), w2, preferred_element_type=jnp.float32) + b2

    # Residual: re-read x from VMEM (cheap vld) instead of keeping it live
    # across both matmuls.
    o_ref[...] = (h + x_ref[...].astype(jnp.float32)).astype(o_ref.dtype)


def prepare_params(params, weight_dtype=None):
    """One-time parameter packing (do NOT call per forward pass).

    - nn.Linear computes x @ W.T + b with W of shape (out, in); pre-transpose
      to (in, out) once here instead of per call.
    - Pack the six per-channel vectors into a single sublane-aligned (8, C)
      array (2 zero-padding rows).
    - Optionally cast weights to bf16 (or fp8 on v7x) for native MXU rate and
      half/quarter the weight VMEM footprint.
    """
    C = params["w1"].shape[0]
    w1t = jnp.asarray(params["w1"]).T
    w2t = jnp.asarray(params["w2"]).T
    if weight_dtype is not None:
        w1t = w1t.astype(weight_dtype)
        w2t = w2t.astype(weight_dtype)
    zeros = jnp.zeros((C,), jnp.float32)
    pvec = jnp.stack(
        [
            params["gamma1"], params["beta1"], params["b1"],
            params["gamma2"], params["beta2"], params["b2"],
            zeros, zeros,
        ]
    ).astype(jnp.float32)  # (8, C)
    return {"w1t": w1t, "w2t": w2t, "pvec": pvec}


def _choose_seq_tile(T, B):
    # Largest divisor of T that is <= 512 rows (keeps double-buffered in/out
    # tiles well inside scoped VMEM for typical C) and preferably a multiple of
    # 8 sublanes, while leaving >= 2 total grid steps so both TensorCores get
    # work under megacore sharding.
    candidates = [d for d in range(1, T + 1) if T % d == 0 and d <= 512]
    aligned = [d for d in candidates if d % 8 == 0]
    tile = max(aligned) if aligned else max(candidates)
    if B * (T // tile) < 2:
        smaller = [d for d in candidates if d < tile]
        if smaller:
            tile = max(smaller)
    return tile


def dense_res_block(x, scale, shift, prepared, *, seq_tile=None,
                    vmem_limit_bytes=None, single_buffer_weights=False):
    """x: (B, T, C); scale, shift: (B, C); prepared = prepare_params(params)."""
    B, T, C = x.shape
    if seq_tile is None:
        seq_tile = _choose_seq_tile(T, B)
    assert T % seq_tile == 0

    # Pack FiLM scale/shift into one (B, 2, C) array -> single DMA stream.
    film = jnp.stack([scale, shift], axis=1)

    w1t, w2t, pvec = prepared["w1t"], prepared["w2t"], prepared["pvec"]

    grid = (B, T // seq_tile)

    # Squeezed leading batch dim: kernel sees (seq_tile, C) / (2, C) directly.
    x_spec = pl.BlockSpec((pl.Squeezed(), seq_tile, C), lambda b, t: (b, t, 0))
    film_spec = pl.BlockSpec((pl.Squeezed(), 2, C), lambda b, t: (b, 0, 0))
    pvec_spec = pl.BlockSpec((8, C), lambda b, t: (0, 0))
    # Constant index_map -> never re-DMA'd across grid steps.  Optionally drop
    # the default second buffer to halve weight VMEM (important on v7x / big C).
    if single_buffer_weights:
        mat_spec = pl.BlockSpec((C, C), lambda b, t: (0, 0),
                                pipeline_mode=pl.Buffered(1))
    else:
        mat_spec = pl.BlockSpec((C, C), lambda b, t: (0, 0))

    return pl.pallas_call(
        dense_res_block_kernel,
        out_shape=jax.ShapeDtypeStruct((B, T, C), x.dtype),
        grid_spec=pltpu.PrefetchScalarGridSpec(
            num_scalar_prefetch=0,
            grid=grid,
            in_specs=[x_spec, film_spec, pvec_spec, mat_spec, mat_spec],
            out_specs=x_spec,
        ),
        compiler_params=pltpu.CompilerParams(
            dimension_semantics=("parallel", "parallel"),
            vmem_limit_bytes=vmem_limit_bytes,
        ),
    )(x, film, pvec, w1t, w2t)


def dense_res_block_reference(x, scale, shift, params):
    B, T, C = x.shape
    sc = scale.reshape(B, 1, C)
    sh = shift.reshape(B, 1, C)

    def ln(h, g, b):
        m = jnp.mean(h, axis=-1, keepdims=True)
        v = jnp.mean((h - m) ** 2, axis=-1, keepdims=True)
        return (h - m) / jnp.sqrt(v + LN_EPS) * g + b

    shortcut = x
    h = ln(x, params["gamma1"], params["beta1"])
    h = sc * h + sh
    h = h * jax.nn.sigmoid(h)
    h = h @ params["w1"].T + params["b1"]
    h = ln(h, params["gamma2"], params["beta2"])
    h = sc * h + sh
    h = h * jax.nn.sigmoid(h)
    h = h @ params["w2"].T + params["b2"]
    return h + shortcut


def init_params(key, C):
    # Synthetic init mirroring nn.Linear default (U[-1/sqrt(C), 1/sqrt(C)]) and
    # nn.LayerNorm default (gamma=1, beta=0).
    k1, k2, k3, k4 = jax.random.split(key, 4)
    bound = 1.0 / jnp.sqrt(C)
    return {
        "w1": jax.random.uniform(k1, (C, C), jnp.float32, -bound, bound),
        "b1": jax.random.uniform(k2, (C,), jnp.float32, -bound, bound),
        "w2": jax.random.uniform(k3, (C, C), jnp.float32, -bound, bound),
        "b2": jax.random.uniform(k4, (C,), jnp.float32, -bound, bound),
        "gamma1": jnp.ones((C,), jnp.float32),
        "beta1": jnp.zeros((C,), jnp.float32),
        "gamma2": jnp.ones((C,), jnp.float32),
        "beta2": jnp.zeros((C,), jnp.float32),
    }


if __name__ == "__main__":
    # Small demo shapes (production wants C a multiple of 128 and seq_tile a
    # multiple of 8/16 for full lane/MXU utilization).
    B, T, C = 2, 8, 32

    key = jax.random.PRNGKey(0)
    kx, ksc, ksh, kp = jax.random.split(key, 4)
    x = jax.random.normal(kx, (B, T, C), jnp.float32)
    scale = jax.random.normal(ksc, (B, C), jnp.float32)
    shift = jax.random.normal(ksh, (B, C), jnp.float32)
    params = init_params(kp, C)

    # One-time packing / pre-transpose (use weight_dtype=jnp.bfloat16 for
    # native-rate MXU on v5e/v6e/v7x when accuracy allows).
    prepared = prepare_params(params)

    out = dense_res_block(x, scale, shift, prepared)
    out = jax.block_until_ready(out)

    ref = dense_res_block_reference(x, scale, shift, params)
    assert out.shape == (B, T, C)
    assert jnp.allclose(out, ref, atol=1e-4, rtol=1e-4), "mismatch vs reference"

    print("KERNEL_OK")
</pallas_src>

<mosaic_0001>
module attributes {stable_mosaic.version = 11 : i64} {
  func.func @dense_res_block_kernel(%arg0: i32, %arg1: i32, %arg2: memref<1x8x32xf32, #tpu.memory_space<vmem>>, %arg3: memref<1x2x32xf32, #tpu.memory_space<vmem>>, %arg4: memref<8x32xf32, #tpu.memory_space<vmem>>, %arg5: memref<32x32xf32, #tpu.memory_space<vmem>>, %arg6: memref<32x32xf32, #tpu.memory_space<vmem>>, %arg7: memref<1x8x32xf32, #tpu.memory_space<vmem>>) attributes {dimension_semantics = [#tpu.dimension_semantics<parallel>, #tpu.dimension_semantics<parallel>], iteration_bounds = array<i64: 2, 1>, scalar_prefetch = 0 : i64, scratch_operands = 0 : i64, tpu.core_type = #tpu.core_type<tc>, window_params = [{transform_indices = @transform_0, window_bounds = array<i64: 1, 8, 32>}, {transform_indices = @transform_1, window_bounds = array<i64: 1, 2, 32>}, {pipeline_mode = #tpu.pipeline_mode<synchronous>, transform_indices = @transform_2, window_bounds = array<i64: 8, 32>}, {pipeline_mode = #tpu.pipeline_mode<synchronous>, transform_indices = @transform_3, window_bounds = array<i64: 32, 32>}, {pipeline_mode = #tpu.pipeline_mode<synchronous>, transform_indices = @transform_4, window_bounds = array<i64: 32, 32>}, {transform_indices = @transform_5, window_bounds = array<i64: 1, 8, 32>}]} {
    %c0 = arith.constant 0 : index
    %c0_0 = arith.constant 0 : index
    %c0_1 = arith.constant 0 : index
    %0 = vector.load %arg2[%c0, %c0_0, %c0_1] : memref<1x8x32xf32, #tpu.memory_space<vmem>>, vector<1x8x32xf32>
    %1 = vector.shape_cast %0 : vector<1x8x32xf32> to vector<8x32xf32>
    %c0_2 = arith.constant 0 : index
    %c0_3 = arith.constant 0 : index
    %c0_4 = arith.constant 0 : index
    %2 = vector.load %arg3[%c0_2, %c0_3, %c0_4] : memref<1x2x32xf32, #tpu.memory_space<vmem>>, vector<1x2x32xf32>
    %3 = vector.shape_cast %2 : vector<1x2x32xf32> to vector<2x32xf32>
    %4 = vector.extract_strided_slice %3 {offsets = [0, 0], sizes = [1, 32], strides = [1, 1]} : vector<2x32xf32> to vector<1x32xf32>
    %5 = vector.extract_strided_slice %3 {offsets = [1, 0], sizes = [1, 32], strides = [1, 1]} : vector<2x32xf32> to vector<1x32xf32>
    %c0_5 = arith.constant 0 : index
    %c0_6 = arith.constant 0 : index
    %6 = vector.load %arg4[%c0_5, %c0_6] : memref<8x32xf32, #tpu.memory_space<vmem>>, vector<8x32xf32>
    %7 = vector.extract_strided_slice %6 {offsets = [0, 0], sizes = [1, 32], strides = [1, 1]} : vector<8x32xf32> to vector<1x32xf32>
    %8 = vector.extract_strided_slice %6 {offsets = [1, 0], sizes = [1, 32], strides = [1, 1]} : vector<8x32xf32> to vector<1x32xf32>
    %9 = vector.extract_strided_slice %6 {offsets = [2, 0], sizes = [1, 32], strides = [1, 1]} : vector<8x32xf32> to vector<1x32xf32>
    %10 = vector.extract_strided_slice %6 {offsets = [3, 0], sizes = [1, 32], strides = [1, 1]} : vector<8x32xf32> to vector<1x32xf32>
    %11 = vector.extract_strided_slice %6 {offsets = [4, 0], sizes = [1, 32], strides = [1, 1]} : vector<8x32xf32> to vector<1x32xf32>
    %12 = vector.extract_strided_slice %6 {offsets = [5, 0], sizes = [1, 32], strides = [1, 1]} : vector<8x32xf32> to vector<1x32xf32>
    %13 = arith.mulf %7, %4 : vector<1x32xf32>
    %14 = arith.mulf %8, %4 : vector<1x32xf32>
    %15 = arith.addf %14, %5 : vector<1x32xf32>
    %16 = arith.mulf %10, %4 : vector<1x32xf32>
    %17 = arith.mulf %11, %4 : vector<1x32xf32>
    %18 = arith.addf %17, %5 : vector<1x32xf32>
    %c0_7 = arith.constant 0 : index
    %c0_8 = arith.constant 0 : index
    %19 = vector.load %arg5[%c0_7, %c0_8] : memref<32x32xf32, #tpu.memory_space<vmem>>, vector<32x32xf32>
    %c0_9 = arith.constant 0 : index
    %c0_10 = arith.constant 0 : index
    %20 = vector.load %arg6[%c0_9, %c0_10] : memref<32x32xf32, #tpu.memory_space<vmem>>, vector<32x32xf32>
    %cst = arith.constant dense<0.000000e+00> : vector<8xf32>
    %21 = vector.multi_reduction <add>, %1, %cst [1] : vector<8x32xf32> to vector<8xf32>
    %22 = vector.shape_cast %21 : vector<8xf32> to vector<8x1xf32>
    %cst_11 = arith.constant 3.200000e+01 : f32
    %23 = vector.broadcast %cst_11 : f32 to vector<8x1xf32>
    %24 = arith.divf %22, %23 : vector<8x1xf32>
    %25 = arith.mulf %1, %1 : vector<8x32xf32>
    %cst_12 = arith.constant dense<0.000000e+00> : vector<8xf32>
    %26 = vector.multi_reduction <add>, %25, %cst_12 [1] : vector<8x32xf32> to vector<8xf32>
    %27 = vector.shape_cast %26 : vector<8xf32> to vector<8x1xf32>
    %cst_13 = arith.constant 3.200000e+01 : f32
    %28 = vector.broadcast %cst_13 : f32 to vector<8x1xf32>
    %29 = arith.divf %27, %28 : vector<8x1xf32>
    %30 = arith.mulf %24, %24 : vector<8x1xf32>
    %31 = arith.subf %29, %30 : vector<8x1xf32>
    %cst_14 = arith.constant 0.000000e+00 : f32
    %32 = vector.broadcast %cst_14 : f32 to vector<8x1xf32>
    %33 = arith.maximumf %31, %32 : vector<8x1xf32>
    %cst_15 = arith.constant 9.99999974E-6 : f32
    %34 = vector.broadcast %cst_15 : f32 to vector<8x1xf32>
    %35 = arith.addf %33, %34 : vector<8x1xf32>
    %36 = math.rsqrt %35 : vector<8x1xf32>
    %37 = vector.broadcast %24 : vector<8x1xf32> to vector<8x32xf32>
    %38 = arith.subf %1, %37 : vector<8x32xf32>
    %39 = vector.broadcast %36 : vector<8x1xf32> to vector<8x32xf32>
    %40 = arith.mulf %38, %39 : vector<8x32xf32>
    %41 = vector.broadcast %13 : vector<1x32xf32> to vector<8x32xf32>
    %42 = arith.mulf %40, %41 : vector<8x32xf32>
    %43 = vector.broadcast %15 : vector<1x32xf32> to vector<8x32xf32>
    %44 = arith.addf %42, %43 : vector<8x32xf32>
    %45 = arith.negf %44 : vector<8x32xf32>
    %46 = math.exp %45 : vector<8x32xf32>
    %cst_16 = arith.constant 1.000000e+00 : f32
    %47 = vector.broadcast %cst_16 : f32 to vector<8x32xf32>
    %48 = arith.addf %47, %46 : vector<8x32xf32>
    %49 = arith.divf %47, %48 : vector<8x32xf32>
    %50 = arith.mulf %44, %49 : vector<8x32xf32>
    %cst_17 = arith.constant dense<0.000000e+00> : vector<8x32xf32>
    %51 = tpu.matmul %50, %19, %cst_17 {dimension_numbers = #tpu.dot_dimension_numbers<[1], [0], [0], [1], [0, 0, 1, 1], [], []>} : vector<8x32xf32>, vector<32x32xf32>, vector<8x32xf32> -> vector<8x32xf32>
    %52 = vector.broadcast %9 : vector<1x32xf32> to vector<8x32xf32>
    %53 = arith.addf %51, %52 : vector<8x32xf32>
    %cst_18 = arith.constant dense<0.000000e+00> : vector<8xf32>
    %54 = vector.multi_reduction <add>, %53, %cst_18 [1] : vector<8x32xf32> to vector<8xf32>
    %55 = vector.shape_cast %54 : vector<8xf32> to vector<8x1xf32>
    %cst_19 = arith.constant 3.200000e+01 : f32
    %56 = vector.broadcast %cst_19 : f32 to vector<8x1xf32>
    %57 = arith.divf %55, %56 : vector<8x1xf32>
    %58 = arith.mulf %53, %53 : vector<8x32xf32>
    %cst_20 = arith.constant dense<0.000000e+00> : vector<8xf32>
    %59 = vector.multi_reduction <add>, %58, %cst_20 [1] : vector<8x32xf32> to vector<8xf32>
    %60 = vector.shape_cast %59 : vector<8xf32> to vector<8x1xf32>
    %cst_21 = arith.constant 3.200000e+01 : f32
    %61 = vector.broadcast %cst_21 : f32 to vector<8x1xf32>
    %62 = arith.divf %60, %61 : vector<8x1xf32>
    %63 = arith.mulf %57, %57 : vector<8x1xf32>
    %64 = arith.subf %62, %63 : vector<8x1xf32>
    %cst_22 = arith.constant 0.000000e+00 : f32
    %65 = vector.broadcast %cst_22 : f32 to vector<8x1xf32>
    %66 = arith.maximumf %64, %65 : vector<8x1xf32>
    %cst_23 = arith.constant 9.99999974E-6 : f32
    %67 = vector.broadcast %cst_23 : f32 to vector<8x1xf32>
    %68 = arith.addf %66, %67 : vector<8x1xf32>
    %69 = math.rsqrt %68 : vector<8x1xf32>
    %70 = vector.broadcast %57 : vector<8x1xf32> to vector<8x32xf32>
    %71 = arith.subf %53, %70 : vector<8x32xf32>
    %72 = vector.broadcast %69 : vector<8x1xf32> to vector<8x32xf32>
    %73 = arith.mulf %71, %72 : vector<8x32xf32>
    %74 = vector.broadcast %16 : vector<1x32xf32> to vector<8x32xf32>
    %75 = arith.mulf %73, %74 : vector<8x32xf32>
    %76 = vector.broadcast %18 : vector<1x32xf32> to vector<8x32xf32>
    %77 = arith.addf %75, %76 : vector<8x32xf32>
    %78 = arith.negf %77 : vector<8x32xf32>
    %79 = math.exp %78 : vector<8x32xf32>
    %cst_24 = arith.constant 1.000000e+00 : f32
    %80 = vector.broadcast %cst_24 : f32 to vector<8x32xf32>
    %81 = arith.addf %80, %79 : vector<8x32xf32>
    %82 = arith.divf %80, %81 : vector<8x32xf32>
    %83 = arith.mulf %77, %82 : vector<8x32xf32>
    %cst_25 = arith.constant dense<0.000000e+00> : vector<8x32xf32>
    %84 = tpu.matmul %83, %20, %cst_25 {dimension_numbers = #tpu.dot_dimension_numbers<[1], [0], [0], [1], [0, 0, 1, 1], [], []>} : vector<8x32xf32>, vector<32x32xf32>, vector<8x32xf32> -> vector<8x32xf32>
    %85 = vector.broadcast %12 : vector<1x32xf32> to vector<8x32xf32>
    %86 = arith.addf %84, %85 : vector<8x32xf32>
    %c0_26 = arith.constant 0 : index
    %c0_27 = arith.constant 0 : index
    %c0_28 = arith.constant 0 : index
    %87 = vector.load %arg2[%c0_26, %c0_27, %c0_28] : memref<1x8x32xf32, #tpu.memory_space<vmem>>, vector<1x8x32xf32>
    %88 = vector.shape_cast %87 : vector<1x8x32xf32> to vector<8x32xf32>
    %89 = arith.addf %86, %88 : vector<8x32xf32>
    %c0_29 = arith.constant 0 : index
    %c0_30 = arith.constant 0 : index
    %c0_31 = arith.constant 0 : index
    %90 = vector.load %arg7[%c0_29, %c0_30, %c0_31] : memref<1x8x32xf32, #tpu.memory_space<vmem>>, vector<1x8x32xf32>
    %91 = vector.shape_cast %90 : vector<1x8x32xf32> to vector<8x32xf32>
    %92 = vector.shape_cast %89 : vector<8x32xf32> to vector<1x8x32xf32>
    tpu.vector_store %arg7[%c0_29, %c0_30, %c0_31], %92 {strides = array<i32>} : memref<1x8x32xf32, #tpu.memory_space<vmem>>, vector<1x8x32xf32>,
    return
  }
  func.func @transform_0(%arg0: i32, %arg1: i32) -> (i32, i32, i32) {
    %c0_i32 = arith.constant 0 : i32
    %c0_i32_0 = arith.constant 0 : i32
    return %arg0, %arg1, %c0_i32 : i32, i32, i32
  }
  func.func @transform_1(%arg0: i32, %arg1: i32) -> (i32, i32, i32) {
    %c0_i32 = arith.constant 0 : i32
    %c0_i32_0 = arith.constant 0 : i32
    %c0_i32_1 = arith.constant 0 : i32
    return %arg0, %c0_i32, %c0_i32_0 : i32, i32, i32
  }
  func.func @transform_2(%arg0: i32, %arg1: i32) -> (i32, i32) {
    %c0_i32 = arith.constant 0 : i32
    %c0_i32_0 = arith.constant 0 : i32
    %c0_i32_1 = arith.constant 0 : i32
    return %c0_i32, %c0_i32_0 : i32, i32
  }
  func.func @transform_3(%arg0: i32, %arg1: i32) -> (i32, i32) {
    %c0_i32 = arith.constant 0 : i32
    %c0_i32_0 = arith.constant 0 : i32
    %c0_i32_1 = arith.constant 0 : i32
    return %c0_i32, %c0_i32_0 : i32, i32
  }
  func.func @transform_4(%arg0: i32, %arg1: i32) -> (i32, i32) {
    %c0_i32 = arith.constant 0 : i32
    %c0_i32_0 = arith.constant 0 : i32
    %c0_i32_1 = arith.constant 0 : i32
    return %c0_i32, %c0_i32_0 : i32, i32
  }
  func.func @transform_5(%arg0: i32, %arg1: i32) -> (i32, i32, i32) {
    %c0_i32 = arith.constant 0 : i32
    %c0_i32_0 = arith.constant 0 : i32
    return %arg0, %arg1, %c0_i32 : i32, i32, i32
  }
}

</mosaic_0001>

<llo_original>
// kernel: tpu_custom_call.1
$region0: #{tpu_custom_call.1}
  #allocation0 [shape = 'u32[]', space=smem, size = 0x4, offset = 0x4, fixed_abs, tag = 'smem constant byte address 0x4 - core index']
  #allocation1 [shape = 'u32[144,128]{1,0:T(1,128)}', space=vmem, size = 0x12000, scoped, tag = 'internal scratch']
  %s0 = inlined_call_operand.hbm [shape: f32[2,8,32], index: 0, kind: input, shape index: {}]
  %s1 = inlined_call_operand.hbm [shape: f32[2,2,32], index: 1, kind: input, shape index: {}]
  %s2 = inlined_call_operand.hbm [shape: f32[8,32], index: 2, kind: input, shape index: {}]
  %s3 = inlined_call_operand.hbm [shape: f32[32,32], index: 3, kind: input, shape index: {}]
  %s4 = inlined_call_operand.hbm [shape: f32[32,32], index: 4, kind: input, shape index: {}]
  %s5 = inlined_call_operand.hbm [shape: f32[2,8,32], index: 5, kind: output, shape index: {}]
  %s6 = sld [smem:[#allocation0]]
  $region73: #{tpu_custom_call.1} parent=0
    _
  %s8 = ssub.s32 1, %s6
  %s9 = scalar_select 0, %s8, %s6
  $region1: #{tpu_custom_call.1} parent=0
    #allocation2 [shape = 'u8[8192]{0}', space=vmem, size = 0x2000, scoped, tag = 'input window, operand 0']
    #allocation3 [shape = 's32[2]{0}', space=sflag, size = 0x8, scoped, tag = 'scoped memory for tpu_custom_call.1']
    #allocation4 [shape = 's32[2]{0}', space=sflag, size = 0x8, scoped, tag = 'scoped memory for tpu_custom_call.1']
    #allocation5 [shape = 'u8[2048]{0}', space=vmem, size = 0x800, scoped, tag = 'input window, operand 1']
    #allocation6 [shape = 's32[2]{0}', space=sflag, size = 0x8, scoped, tag = 'scoped memory for tpu_custom_call.1']
    #allocation7 [shape = 'u8[4096]{0}', space=vmem, size = 0x1000, scoped, tag = 'input window, operand 2, single buffered']
    #allocation8 [shape = 'u8[16384]{0}', space=vmem, size = 0x4000, scoped, tag = 'input window, operand 3, single buffered']
    #allocation9 [shape = 's32[1]{0}', space=sflag, size = 0x4, scoped, tag = 'scoped memory for tpu_custom_call.1']
    #allocation10 [shape = 'u8[16384]{0}', space=vmem, size = 0x4000, scoped, tag = 'input window, operand 4, single buffered']
    #allocation11 [shape = 'u8[8192]{0}', space=vmem, size = 0x2000, scoped, tag = 'output window, operand 0']
    %10 = vsyncpa [#allocation3], 0
    %s11 = scalar_lea.sflag [#allocation3], 1
    %12 = vsyncpa %s11, 0
    %13 = vsyncpa [#allocation6], 0
    %s14 = scalar_lea.sflag [#allocation6], 1
    %15 = vsyncpa %s14, 0
    %16 = vsyncpa [#allocation9], 0
    %17 = vsyncpa [#allocation4], 0
    %s18 = scalar_lea.sflag [#allocation4], 1
    %19 = vsyncpa %s18, 0
    loop: start=0, step=1, limit=4
    $region2: #{tpu_custom_call.1} parent=1 // loop_pre_header
      _
    $region3: #{tpu_custom_call.1} parent=1 // loop_header
      %s21 = sphi 0, %s25
      %p22 = scmp.ge.s32.totalorder %s21, 4
      %s28 = sphi 0, %s40
      %s29 = sphi 0, %s36
      %s30 = sphi 0, %s28
      %s31 = sphi 0, %s29
      %s32 = sphi 0, %s30
      %s33 = sphi 0, %s31
      %s45 = sphi 0, %s47
      %s48 = sphi 0, %s45
      %s49 = sphi 0, %s48
      %s65 = sphi 0, %s49
      %s71 = sphi 0, %s73
      %s74 = sphi 0, %s71
      %s75 = sphi 0, %s74
      %s91 = sphi 0, %s75
      %s95 = sphi 0, %s95
      %s97 = sphi 0, %s95
      %s98 = sphi 0, %s97
      %s112 = sphi 0, %s98
      %s116 = sphi 0, %s116
      %s118 = sphi 0, %s116
      %s119 = sphi 0, %s118
      %s133 = sphi 0, %s119
      %s137 = sphi 0, %s137
      %s139 = sphi 0, %s137
      %s140 = sphi 0, %s139
      %s154 = sphi 0, %s140
      %s162 = sphi 0, %s164
      %s165 = sphi 0, %s162
      %s166 = sphi 0, %s165
      %s182 = sphi 0, %s166
    $region4: #{tpu_custom_call.1} parent=1 // loop_header_branch
      %24 = sbr.rel (%p22) target = $region8
    $region5: #{tpu_custom_call.1} parent=1 // loop_body
      %s26 = ssub.s32 %s21, 1
      %s27 = ssub.s32 %s21, 2
      %s34 = sadd.s32 1, %s29
      %p35 = scmp.ge.s32.totalorder %s34, 1
      %s36 = scalar_select %p35, 0, %s34
      %s37 = sadd.s32 1, %s28
      %s38 = scalar_select %p35, %s37, %s28
      %p39 = scmp.ge.s32.totalorder %s38, 2
      %s40 = scalar_select %p39, 0, %s38
      %s41 = ssub.s32 %s28, %s40
      %s42 = ssub.s32 %s29, %s36
      %s43 = sor.u32 %s41, %s42
      %p44 = scmp.eq.s32.totalorder %s43, 0
      %s46 = sadd.s32 %s45, 1
      %s47 = scalar_select %p44, %s45, %s46
      %p50 = pneg %p44
      %p51 = scmp.eq.s32.totalorder %s21, 1
      %p52 = por %p50, %p51
      %p53 = scmp.ne.s32.totalorder %s45, %s48
      %p54 = scmp.eq.s32.totalorder %s21, 0
      %p55 = por %p53, %p54
      %p56 = scmp.ne.s32.totalorder %s45, %s48
      %p57 = scmp.eq.s32.totalorder %s26, 1
      %p58 = por %p56, %p57
      %p59 = scmp.ne.s32.totalorder %s48, %s49
      %p60 = scmp.eq.s32.totalorder %s26, 0
      %p61 = por %p59, %p60
      %p62 = scmp.ne.s32.totalorder %s48, %s49
      %p63 = scmp.eq.s32.totalorder %s27, 1
      %p64 = por %p62, %p63
      %p66 = scmp.ne.s32.totalorder %s49, %s65
      %p67 = scmp.eq.s32.totalorder %s27, 0
      %p68 = por %p66, %p67
      %s69 = ssub.s32 %s28, %s40
      %p70 = scmp.eq.s32.totalorder %s69, 0
      %s72 = sadd.s32 %s71, 1
      %s73 = scalar_select %p70, %s71, %s72
      %p76 = pneg %p70
      %p77 = scmp.eq.s32.totalorder %s21, 1
      %p78 = por %p76, %p77
      %p79 = scmp.ne.s32.totalorder %s71, %s74
      %p80 = scmp.eq.s32.totalorder %s21, 0
      %p81 = por %p79, %p80
      %p82 = scmp.ne.s32.totalorder %s71, %s74
      %p83 = scmp.eq.s32.totalorder %s26, 1
      %p84 = por %p82, %p83
      %p85 = scmp.ne.s32.totalorder %s74, %s75
      %p86 = scmp.eq.s32.totalorder %s26, 0
      %p87 = por %p85, %p86
      %p88 = scmp.ne.s32.totalorder %s74, %s75
      %p89 = scmp.eq.s32.totalorder %s27, 1
      %p90 = por %p88, %p89
      %p92 = scmp.ne.s32.totalorder %s75, %s91
      %p93 = scmp.eq.s32.totalorder %s27, 0
      %p94 = por %p92, %p93
      %s96 = sadd.s32 %s95, 1
      %p99 = scmp.eq.s32.totalorder %s21, 1
      %p100 = scmp.ne.s32.totalorder %s95, %s97
      %p101 = scmp.eq.s32.totalorder %s21, 0
      %p102 = por %p100, %p101
      %p103 = scmp.ne.s32.totalorder %s95, %s97
      %p104 = scmp.eq.s32.totalorder %s26, 1
      %p105 = por %p103, %p104
      %p106 = scmp.ne.s32.totalorder %s97, %s98
      %p107 = scmp.eq.s32.totalorder %s26, 0
      %p108 = por %p106, %p107
      %p109 = scmp.ne.s32.totalorder %s97, %s98
      %p110 = scmp.eq.s32.totalorder %s27, 1
      %p111 = por %p109, %p110
      %p113 = scmp.ne.s32.totalorder %s98, %s112
      %p114 = scmp.eq.s32.totalorder %s27, 0
      %p115 = por %p113, %p114
      %s117 = sadd.s32 %s116, 1
      %p120 = scmp.eq.s32.totalorder %s21, 1
      %p121 = scmp.ne.s32.totalorder %s116, %s118
      %p122 = scmp.eq.s32.totalorder %s21, 0
      %p123 = por %p121, %p122
      %p124 = scmp.ne.s32.totalorder %s116, %s118
      %p125 = scmp.eq.s32.totalorder %s26, 1
      %p126 = por %p124, %p125
      %p127 = scmp.ne.s32.totalorder %s118, %s119
      %p128 = scmp.eq.s32.totalorder %s26, 0
      %p129 = por %p127, %p128
      %p130 = scmp.ne.s32.totalorder %s118, %s119
      %p131 = scmp.eq.s32.totalorder %s27, 1
      %p132 = por %p130, %p131
      %p134 = scmp.ne.s32.totalorder %s119, %s133
      %p135 = scmp.eq.s32.totalorder %s27, 0
      %p136 = por %p134, %p135
      %s138 = sadd.s32 %s137, 1
      %p141 = scmp.eq.s32.totalorder %s21, 1
      %p142 = scmp.ne.s32.totalorder %s137, %s139
      %p143 = scmp.eq.s32.totalorder %s21, 0
      %p144 = por %p142, %p143
      %p145 = scmp.ne.s32.totalorder %s137, %s139
      %p146 = scmp.eq.s32.totalorder %s26, 1
      %p147 = por %p145, %p146
      %p148 = scmp.ne.s32.totalorder %s139, %s140
      %p149 = scmp.eq.s32.totalorder %s26, 0
      %p150 = por %p148, %p149
      %p151 = scmp.ne.s32.totalorder %s139, %s140
      %p152 = scmp.eq.s32.totalorder %s27, 1
      %p153 = por %p151, %p152
      %p155 = scmp.ne.s32.totalorder %s140, %s154
      %p156 = scmp.eq.s32.totalorder %s27, 0
      %p157 = por %p155, %p156
      %s158 = ssub.s32 %s28, %s40
      %s159 = ssub.s32 %s29, %s36
      %s160 = sor.u32 %s158, %s159
      %p161 = scmp.eq.s32.totalorder %s160, 0
      %s163 = sadd.s32 %s162, 1
      %s164 = scalar_select %p161, %s162, %s163
      %p167 = pneg %p161
      %p168 = scmp.eq.s32.totalorder %s21, 1
      %p169 = por %p167, %p168
      %p170 = scmp.ne.s32.totalorder %s162, %s165
      %p171 = scmp.eq.s32.totalorder %s21, 0
      %p172 = por %p170, %p171
      %p173 = scmp.ne.s32.totalorder %s162, %s165
      %p174 = scmp.eq.s32.totalorder %s26, 1
      %p175 = por %p173, %p174
      %p176 = scmp.ne.s32.totalorder %s165, %s166
      %p177 = scmp.eq.s32.totalorder %s26, 0
      %p178 = por %p176, %p177
      %p179 = scmp.ne.s32.totalorder %s165, %s166
      %p180 = scmp.eq.s32.totalorder %s27, 1
      %p181 = por %p179, %p180
      %p183 = scmp.ne.s32.totalorder %s166, %s182
      %p184 = scmp.eq.s32.totalorder %s27, 0
      %p185 = por %p183, %p184
      %p186 = scmp.le.s32.totalorder 1, %s21
      %p187 = scmp.lt.s32.totalorder %s21, 3
      %p188 = pnand %p186, %p187
      %p189 = pneg %p188
      // Predicated region
      $region9: #{tpu_custom_call.1} parent=5 // pred_check
        _
      $region10: #{tpu_custom_call.1} parent=5 // pred_check_branch
        %191 = sbr.rel (%p188) target = $region12
      $region11: #{tpu_custom_call.1} parent=5 // pred_region
        %s192 = ssub.s32 %s21, 1
        // Predicated region
        $region13: #{tpu_custom_call.1} parent=11 // pred_check
          %p193 = pneg %p108
        $region14: #{tpu_custom_call.1} parent=11 // pred_check_branch
          %195 = sbr.rel (%p193) target = $region16
        $region15: #{tpu_custom_call.1} parent=11 // pred_region
          %s197 = ssub.s32 128, 128
          %198 = vsyncadd [#allocation6], %s197
          %s200 = sshll.u32 [#allocation7], 4
          %s201 = int_to_ptr.vmem [resolvable:$true] %s200
          %203 = dma.hbm_to_vmem [thread:$0]  %s2, 128, %s201, [#allocation6]
        $region16: #{tpu_custom_call.1} parent=11 // pred_fallthru
          _
        // Predicated region
        $region17: #{tpu_custom_call.1} parent=11 // pred_check
          %p204 = pneg %p129
        $region18: #{tpu_custom_call.1} parent=11 // pred_check_branch
          %206 = sbr.rel (%p204) target = $region20
        $region19: #{tpu_custom_call.1} parent=11 // pred_region
          %s208 = ssub.s32 512, 512
          %209 = vsyncadd [#allocation9], %s208
          %s210 = sshll.u32 [#allocation8], 4
          %s211 = int_to_ptr.vmem [resolvable:$true] %s210
          %216 = dma.hbm_to_vmem [thread:$0]  %s3, 512, %s211, [#allocation9], 128, 128, 8
        $region20: #{tpu_custom_call.1} parent=11 // pred_fallthru
          _
        // Predicated region
        $region21: #{tpu_custom_call.1} parent=11 // pred_check
          %p217 = pneg %p150
        $region22: #{tpu_custom_call.1} parent=11 // pred_check_branch
          %219 = sbr.rel (%p217) target = $region24
        $region23: #{tpu_custom_call.1} parent=11 // pred_region
          %s221 = ssub.s32 512, 512
          %222 = vsyncadd [#allocation9], %s221
          %s223 = sshll.u32 [#allocation10], 4
          %s224 = int_to_ptr.vmem [resolvable:$true] %s223
          %229 = dma.hbm_to_vmem [thread:$0]  %s4, 512, %s224, [#allocation9], 128, 128, 8
        $region24: #{tpu_custom_call.1} parent=11 // pred_fallthru
          _
      $region12: #{tpu_custom_call.1} parent=5 // pred_fallthru
        _
      %p230 = scmp.lt.s32.totalorder %s21, 2
      // Predicated region
      $region25: #{tpu_custom_call.1} parent=5 // pred_check
        %p231 = pneg %p230
      $region26: #{tpu_custom_call.1} parent=5 // pred_check_branch
        %233 = sbr.rel (%p231) target = $region28
      $region27: #{tpu_custom_call.1} parent=5 // pred_region
        // Predicated region
        $region29: #{tpu_custom_call.1} parent=27 // pred_check
          %p234 = pneg %p55
        $region30: #{tpu_custom_call.1} parent=27 // pred_check_branch
          %236 = sbr.rel (%p234) target = $region32
        $region31: #{tpu_custom_call.1} parent=27 // pred_region
          %s237 = sand.u32 %s45, 1
          %s238 = scalar_lea.sflag [#allocation3], %s237
          %s239 = sand.u32 %s45, 1
          %s240 = smul.addr %s239, 8
          %s241 = scalar_lea.vmem [#allocation2], %s240
          %s243 = ssub.s32 128, 128
          %244 = vsyncadd %s238, %s243
          %s245 = sadd.s32 %s29, %s28
          %s246 = smul.addr %s245, 128
          %s247 = scalar_lea.hbm %s0, %s246
          %s249 = sshll.u32 %s241, 4
          %s250 = int_to_ptr.vmem [resolvable:$true] %s249
          %252 = dma.hbm_to_vmem [thread:$0]  %s247, 128, %s250, %s238
        $region32: #{tpu_custom_call.1} parent=27 // pred_fallthru
          _
        // Predicated region
        $region33: #{tpu_custom_call.1} parent=27 // pred_check
          %p253 = pneg %p81
        $region34: #{tpu_custom_call.1} parent=27 // pred_check_branch
          %255 = sbr.rel (%p253) target = $region36
        $region35: #{tpu_custom_call.1} parent=27 // pred_region
          %s256 = sand.u32 %s21, 1
          %s257 = scalar_lea.sflag [#allocation6], %s256
          %s258 = sand.u32 %s71, 1
          %s259 = smul.addr %s258, 2
          %s260 = scalar_lea.vmem [#allocation5], %s259
          %s262 = ssub.s32 32, 32
          %263 = vsyncadd %s257, %s262
          %s264 = smul.addr %s28, 32
          %s265 = scalar_lea.hbm %s1, %s264
          %s267 = sshll.u32 %s260, 4
          %s268 = int_to_ptr.vmem [resolvable:$true] %s267
          %270 = dma.hbm_to_vmem [thread:$0]  %s265, 32, %s268, %s257
        $region36: #{tpu_custom_call.1} parent=27 // pred_fallthru
          _
      $region28: #{tpu_custom_call.1} parent=5 // pred_fallthru
        _
      %p271 = scmp.le.s32.totalorder 1, %s21
      %p272 = scmp.lt.s32.totalorder %s21, 3
      %p273 = pnand %p271, %p272
      %p274 = pneg %p273
      // Predicated region
      $region37: #{tpu_custom_call.1} parent=5 // pred_check
        _
      $region38: #{tpu_custom_call.1} parent=5 // pred_check_branch
        %276 = sbr.rel (%p273) target = $region40
      $region39: #{tpu_custom_call.1} parent=5 // pred_region
        %s277 = ssub.s32 %s21, 1
        %s278 = sand.u32 %s48, 1
        %s279 = scalar_lea.sflag [#allocation3], %s278
        %s280 = sand.u32 %s48, 1
        %s281 = smul.addr %s280, 8
        %s282 = scalar_lea.vmem [#allocation2], %s281
        // Predicated region
        $region41: #{tpu_custom_call.1} parent=39 // pred_check
          %p283 = pneg %p61
        $region42: #{tpu_custom_call.1} parent=39 // pred_check_branch
          %285 = sbr.rel (%p283) target = $region44
        $region43: #{tpu_custom_call.1} parent=39 // pred_region
          %286 = dma.done %s279, 128
        $region44: #{tpu_custom_call.1} parent=39 // pred_fallthru
          _
        %s287 = sand.u32 %s26, 1
        %s288 = scalar_lea.sflag [#allocation6], %s287
        %s289 = sand.u32 %s74, 1
        %s290 = smul.addr %s289, 2
        %s291 = scalar_lea.vmem [#allocation5], %s290
        // Predicated region
        $region45: #{tpu_custom_call.1} parent=39 // pred_check
          %p292 = pneg %p87
        $region46: #{tpu_custom_call.1} parent=39 // pred_check_branch
          %294 = sbr.rel (%p292) target = $region48
        $region47: #{tpu_custom_call.1} parent=39 // pred_region
          %295 = dma.done %s288, 32
        $region48: #{tpu_custom_call.1} parent=39 // pred_fallthru
          _
        // Predicated region
        $region49: #{tpu_custom_call.1} parent=39 // pred_check
          %p296 = pneg %p108
        $region50: #{tpu_custom_call.1} parent=39 // pred_check_branch
          %298 = sbr.rel (%p296) target = $region52
        $region51: #{tpu_custom_call.1} parent=39 // pred_region
          %299 = dma.done [#allocation6], 128
        $region52: #{tpu_custom_call.1} parent=39 // pred_fallthru
          _
        // Predicated region
        $region53: #{tpu_custom_call.1} parent=39 // pred_check
          %p300 = pneg %p129
        $region54: #{tpu_custom_call.1} parent=39 // pred_check_branch
          %302 = sbr.rel (%p300) target = $region56
        $region55: #{tpu_custom_call.1} parent=39 // pred_region
          %303 = dma.done [#allocation9], 512
        $region56: #{tpu_custom_call.1} parent=39 // pred_fallthru
          _
        // Predicated region
        $region57: #{tpu_custom_call.1} parent=39 // pred_check
          %p304 = pneg %p150
        $region58: #{tpu_custom_call.1} parent=39 // pred_check_branch
          %306 = sbr.rel (%p304) target = $region60
        $region59: #{tpu_custom_call.1} parent=39 // pred_region
          %307 = dma.done [#allocation9], 512
        $region60: #{tpu_custom_call.1} parent=39 // pred_fallthru
          _
        %s308 = sand.u32 %s48, 1
        %s309 = scalar_lea.sflag [#allocation3], %s308
        %s310 = sand.u32 %s48, 1
        %s311 = smul.addr %s310, 8
        %s312 = scalar_lea.vmem [#allocation2], %s311
        %p313 = pneg %p61
        %p314 = pneg %p58
        %s315 = sand.u32 %s26, 1
        %s316 = scalar_lea.sflag [#allocation6], %s315
        %s317 = sand.u32 %s74, 1
        %s318 = smul.addr %s317, 2
        %s319 = scalar_lea.vmem [#allocation5], %s318
        %p320 = pneg %p87
        %p321 = pneg %p84
        %p322 = pneg %p108
        %p323 = pneg %p105
        %p324 = pneg %p129
        %p325 = pneg %p126
        %p326 = pneg %p150
        %p327 = pneg %p147
        %p328 = pneg %p178
        %p329 = pneg %p175
        %s330 = sand.u32 %s165, 1
        %s331 = scalar_lea.sflag [#allocation4], %s330
        %s332 = sand.u32 %s165, 1
        %s333 = smul.addr %s332, 8
        %s334 = scalar_lea.vmem [#allocation11], %s333
        %v335 = vld [vmem:[%s282] sm:$0xff]
        %v336 = vld [vmem:[%s291] sm:$0x3]
        %v337 = vld [vmem:[#allocation7] sm:$0xff]
        %v338 = vmul.f32 %v337, %v336
        %v340 = vrot.slane %v336, 7
        %v342 = vmul.f32 %v337, %v340
        %v343 = vadd.f32 %v342, %v336
        %v344 = vrot.slane %v336, 5
        %v346 = vmul.f32 %v337, %v344
        %v347 = vrot.slane %v336, 4
        %v349 = vmul.f32 %v337, %v347
        %v350 = vadd.f32 %v349, %v344
        %v351 = vld [vmem:[#allocation8] sm:$0xff]
        %v352 = vld [vmem:[#allocation8 + $0x8] sm:$0xff]
        %v353 = vld [vmem:[#allocation8 + $0x10] sm:$0xff]
        %v354 = vld [vmem:[#allocation8 + $0x18] sm:$0xff]
        %v355 = vld [vmem:[#allocation10] sm:$0xff]
        %v356 = vld [vmem:[#allocation10 + $0x8] sm:$0xff]
        %v357 = vld [vmem:[#allocation10 + $0x10] sm:$0xff]
        %v358 = vld [vmem:[#allocation10 + $0x18] sm:$0xff]
        %vm359 = vcmask 261120
        %v360 = vsel %vm359, %v335, 0.0
        %361 = vadd.xlane.f32.xlu0 %v360
        %v362 = vpop.xlane.xlu0 %361
        %v363 = vrcp.pop 32.0
        %v364 = vmul.f32 %v362, %v363
        %v365 = vmul.f32 %v335, %v335
        %v366 = vsel %vm359, %v365, 0.0
        %367 = vadd.xlane.f32.xlu0 %v366
        %v368 = vpop.xlane.xlu0 %367
        %v369 = vmul.f32 %v368, %v363
        %v370 = vmul.f32 %v364, %v364
        %v371 = vsub.f32 %v369, %v370
        %v372 = vmax.f32 %v371, 0.0
        %v373 = vadd.f32 %v372, 1e-05
        %v374 = vrsqrt.pop %v373
        %v375 = vsub.f32 %v335, %v364
        %v376 = vmul.f32 %v375, %v374
        %v377 = vlaneseq
        %v378 = vshrl.u32 %v377, 7
        %v379 = vsub.s32 0, %v378
        %v380 = vrot.slane %v338, %v379
        %v381 = vmul.f32 %v376, %v380
        %v382 = vlaneseq
        %v383 = vshrl.u32 %v382, 7
        %v384 = vsub.s32 1, %v383
        %v385 = vrot.slane %v343, %v384
        %v386 = vadd.f32 %v381, %v385
        %v387 = vxor.u32 %v386, 2147483648
        %v388 = vmul.f32 %v387, 1.442695
        %v389 = vpow.pop %v388
        %v390 = vadd.f32 %v389, 1.0
        %v391 = vrcp.pop %v390
        %v392 = vmul.f32 1.0, %v391
        %v393 = vmul.f32 %v386, %v392
        %v394 = vlaneseq
        %v395 = vshrl.u32 %v394, 7
        %v396 = vsub.s32 2, %v395
        %v397 = vrot.slane %v337, %v396
        %v399 = vsel %vm359, %v393, 0
        %401 = vmatprep.subr.mxu0 0.0
        %402 = vmatpush1.msra.mxu0 0.0
        %403 = vmatprep.subr.mxu0 0.0
        %404 = vmatpush1.msra.mxu0 0.0
        %405 = vmatprep.subr.mxu0 0.0
        %406 = vmatpush1.msra.mxu0 0.0
        %407 = vmatprep.subr.mxu0 0.0
        %408 = vmatpush1.msra.mxu0 0.0
        %409 = vmatprep.subr.mxu0 0.0
        %410 = vmatpush1.msra.mxu0 0.0
        %411 = vmatprep.subr.mxu0 0.0
        %412 = vmatpush1.msra.mxu0 0.0
        %413 = vmatprep.subr.mxu0 0.0
        %414 = vmatpush1.msra.mxu0 0.0
        %415 = vmatprep.subr.mxu0 0.0
        %416 = vmatpush1.msra.mxu0 0.0
        %417 = vmatprep.subr.mxu0 0.0
        %418 = vmatpush1.msra.mxu0 0.0
        %419 = vmatprep.subr.mxu0 0.0
        %420 = vmatpush1.msra.mxu0 0.0
        %421 = vmatprep.subr.mxu0 0.0
        %422 = vmatpush1.msra.mxu0 0.0
        %423 = vmatprep.subr.mxu0 0.0
        %424 = vmatpush1.msra.mxu0 0.0
        %425 = vmatprep.subr.mxu0 0.0
        %426 = vmatpush1.msra.mxu0 %v354
        %427 = vmatprep.subr.mxu0 0.0
        %428 = vmatpush1.msra.mxu0 %v353
        %429 = vmatprep.subr.mxu0 0.0
        %430 = vmatpush1.msra.mxu0 %v352
        %431 = vmatprep.subr.mxu0 0.0
        %432 = vmatpush1.msra.mxu0 %v351
        %433 = vmatprep.subr.mxu0 0.0
        %434 = vmatpush2.msra.mxu0 0.0
        %435 = vmatprep.subr.mxu0 0.0
        %436 = vmatpush2.msra.mxu0 0.0
        %437 = vmatprep.subr.mxu0 0.0
        %438 = vmatpush2.msra.mxu0 0.0
        %439 = vmatprep.subr.mxu0 0.0
        %440 = vmatpush2.msra.mxu0 0.0
        %441 = vmatprep.subr.mxu0 0.0
        %442 = vmatpush2.msra.mxu0 0.0
        %443 = vmatprep.subr.mxu0 0.0
        %444 = vmatpush2.msra.mxu0 0.0
        %445 = vmatprep.subr.mxu0 0.0
        %446 = vmatpush2.msra.mxu0 0.0
        %447 = vmatprep.subr.mxu0 0.0
        %448 = vmatpush2.msra.mxu0 0.0
        %449 = vmatprep.subr.mxu0 0.0
        %450 = vmatpush2.msra.mxu0 0.0
        %451 = vmatprep.subr.mxu0 0.0
        %452 = vmatpush2.msra.mxu0 0.0
        %453 = vmatprep.subr.mxu0 0.0
        %454 = vmatpush2.msra.mxu0 0.0
        %455 = vmatprep.subr.mxu0 0.0
        %456 = vmatpush2.msra.mxu0 0.0
        %457 = vmatprep.subr.mxu0 0.0
        %458 = vmatpush2.msra.mxu0 0.0
        %459 = vmatprep.subr.mxu0 0.0
        %460 = vmatpush2.msra.mxu0 0.0
        %461 = vmatprep.subr.mxu0 0.0
        %462 = vmatpush2.msra.mxu0 0.0
        %463 = vmatprep.subr.mxu0 0.0
        %464 = vmatpush2.msra.mxu0 0.0
        %465 = vmatprep.mubr.f32.mxu0 0.0
        %466 = vmatmul.mubr.f32.gmra.mxu0 %v399
        %v467 = vpop.f32.mrf.mxu0
        %v468 = vadd.f32 %v397, %v467
        %v469 = vpop.f32.mrf.mxu0
        %470 = vdwg.mxu0
        %v471 = vsel %vm359, %v468, 0.0
        %472 = vadd.xlane.f32.xlu0 %v471
        %v473 = vpop.xlane.xlu0 %472
        %v474 = vmul.f32 %v473, %v363
        %v475 = vmul.f32 %v468, %v468
        %v476 = vsel %vm359, %v475, 0.0
        %477 = vadd.xlane.f32.xlu0 %v476
        %v478 = vpop.xlane.xlu0 %477
        %v479 = vmul.f32 %v478, %v363
        %v480 = vmul.f32 %v474, %v474
        %v481 = vsub.f32 %v479, %v480
        %v482 = vmax.f32 %v481, 0.0
        %v483 = vadd.f32 %v482, 1e-05
        %v484 = vrsqrt.pop %v483
        %v485 = vsub.f32 %v468, %v474
        %v486 = vmul.f32 %v485, %v484
        %v487 = vlaneseq
        %v488 = vshrl.u32 %v487, 7
        %v489 = vsub.s32 3, %v488
        %v490 = vrot.slane %v346, %v489
        %v491 = vmul.f32 %v486, %v490
        %v492 = vlaneseq
        %v493 = vshrl.u32 %v492, 7
        %v494 = vsub.s32 4, %v493
        %v495 = vrot.slane %v350, %v494
        %v496 = vadd.f32 %v491, %v495
        %v497 = vxor.u32 %v496, 2147483648
        %v498 = vmul.f32 %v497, 1.442695
        %v499 = vpow.pop %v498
        %v500 = vadd.f32 %v499, 1.0
        %v501 = vrcp.pop %v500
        %v502 = vmul.f32 1.0, %v501
        %v503 = vmul.f32 %v496, %v502
        %v504 = vlaneseq
        %v505 = vshrl.u32 %v504, 7
        %v506 = vsub.s32 5, %v505
        %v507 = vrot.slane %v337, %v506
        %v509 = vsel %vm359, %v503, 0
        %511 = vmatprep.subr.mxu0 0.0
        %512 = vmatpush1.msra.mxu0 0.0
        %513 = vmatprep.subr.mxu0 0.0
        %514 = vmatpush1.msra.mxu0 0.0
        %515 = vmatprep.subr.mxu0 0.0
        %516 = vmatpush1.msra.mxu0 0.0
        %517 = vmatprep.subr.mxu0 0.0
        %518 = vmatpush1.msra.mxu0 0.0
        %519 = vmatprep.subr.mxu0 0.0
        %520 = vmatpush1.msra.mxu0 0.0
        %521 = vmatprep.subr.mxu0 0.0
        %522 = vmatpush1.msra.mxu0 0.0
        %523 = vmatprep.subr.mxu0 0.0
        %524 = vmatpush1.msra.mxu0 0.0
        %525 = vmatprep.subr.mxu0 0.0
        %526 = vmatpush1.msra.mxu0 0.0
        %527 = vmatprep.subr.mxu0 0.0
        %528 = vmatpush1.msra.mxu0 0.0
        %529 = vmatprep.subr.mxu0 0.0
        %530 = vmatpush1.msra.mxu0 0.0
        %531 = vmatprep.subr.mxu0 0.0
        %532 = vmatpush1.msra.mxu0 0.0
        %533 = vmatprep.subr.mxu0 0.0
        %534 = vmatpush1.msra.mxu0 0.0
        %535 = vmatprep.subr.mxu0 0.0
        %536 = vmatpush1.msra.mxu0 %v358
        %537 = vmatprep.subr.mxu0 0.0
        %538 = vmatpush1.msra.mxu0 %v357
        %539 = vmatprep.subr.mxu0 0.0
        %540 = vmatpush1.msra.mxu0 %v356
        %541 = vmatprep.subr.mxu0 0.0
        %542 = vmatpush1.msra.mxu0 %v355
        %543 = vmatprep.subr.mxu0 0.0
        %544 = vmatpush2.msra.mxu0 0.0
        %545 = vmatprep.subr.mxu0 0.0
        %546 = vmatpush2.msra.mxu0 0.0
        %547 = vmatprep.subr.mxu0 0.0
        %548 = vmatpush2.msra.mxu0 0.0
        %549 = vmatprep.subr.mxu0 0.0
        %550 = vmatpush2.msra.mxu0 0.0
        %551 = vmatprep.subr.mxu0 0.0
        %552 = vmatpush2.msra.mxu0 0.0
        %553 = vmatprep.subr.mxu0 0.0
        %554 = vmatpush2.msra.mxu0 0.0
        %555 = vmatprep.subr.mxu0 0.0
        %556 = vmatpush2.msra.mxu0 0.0
        %557 = vmatprep.subr.mxu0 0.0
        %558 = vmatpush2.msra.mxu0 0.0
        %559 = vmatprep.subr.mxu0 0.0
        %560 = vmatpush2.msra.mxu0 0.0
        %561 = vmatprep.subr.mxu0 0.0
        %562 = vmatpush2.msra.mxu0 0.0
        %563 = vmatprep.subr.mxu0 0.0
        %564 = vmatpush2.msra.mxu0 0.0
        %565 = vmatprep.subr.mxu0 0.0
        %566 = vmatpush2.msra.mxu0 0.0
        %567 = vmatprep.subr.mxu0 0.0
        %568 = vmatpush2.msra.mxu0 0.0
        %569 = vmatprep.subr.mxu0 0.0
        %570 = vmatpush2.msra.mxu0 0.0
        %571 = vmatprep.subr.mxu0 0.0
        %572 = vmatpush2.msra.mxu0 0.0
        %573 = vmatprep.subr.mxu0 0.0
        %574 = vmatpush2.msra.mxu0 0.0
        %575 = vmatprep.mubr.f32.mxu0 0.0
        %576 = vmatmul.mubr.f32.gmra.mxu0 %v509
        %v577 = vpop.f32.mrf.mxu0
        %v578 = vadd.f32 %v507, %v577
        %v579 = vpop.f32.mrf.mxu0
        %580 = vdwg.mxu0
        %v581 = vadd.f32 %v578, %v335
        %582 = vst.msk [vmem:[%s334] sm:$0xff] %vm359, %v581
        %s583 = sand.u32 %s165, 1
        %s584 = scalar_lea.sflag [#allocation4], %s583
        %s585 = sand.u32 %s165, 1
        %s586 = smul.addr %s585, 8
        %s587 = scalar_lea.vmem [#allocation11], %s586
        // Predicated region
        $region61: #{tpu_custom_call.1} parent=39 // pred_check
          %p588 = pneg %p175
        $region62: #{tpu_custom_call.1} parent=39 // pred_check_branch
          %590 = sbr.rel (%p588) target = $region64
        $region63: #{tpu_custom_call.1} parent=39 // pred_region
          %s592 = ssub.s32 128, 128
          %593 = vsyncadd %s584, %s592
          %s594 = sadd.s32 %s31, %s30
          %s595 = smul.addr %s594, 128
          %s596 = scalar_lea.hbm %s5, %s595
          %s598 = sshll.u32 %s587, 4
          %s599 = int_to_ptr.vmem [resolvable:$true] %s598
          %601 = dma.vmem_to_hbm [thread:$0]  %s599, 128, %s596, %s584
        $region64: #{tpu_custom_call.1} parent=39 // pred_fallthru
          _
      $region40: #{tpu_custom_call.1} parent=5 // pred_fallthru
        _
      %p602 = scmp.le.s32.totalorder 2, %s21
      // Predicated region
      $region65: #{tpu_custom_call.1} parent=5 // pred_check
        %p603 = pneg %p602
      $region66: #{tpu_custom_call.1} parent=5 // pred_check_branch
        %605 = sbr.rel (%p603) target = $region68
      $region67: #{tpu_custom_call.1} parent=5 // pred_region
        %s606 = ssub.s32 %s21, 2
        // Predicated region
        $region69: #{tpu_custom_call.1} parent=67 // pred_check
          %p607 = pneg %p181
        $region70: #{tpu_custom_call.1} parent=67 // pred_check_branch
          %609 = sbr.rel (%p607) target = $region72
        $region71: #{tpu_custom_call.1} parent=67 // pred_region
          %s610 = sand.u32 %s166, 1
          %s611 = scalar_lea.sflag [#allocation4], %s610
          %s612 = sand.u32 %s166, 1
          %s613 = smul.addr %s612, 8
          %s614 = scalar_lea.vmem [#allocation11], %s613
          %615 = dma.done %s611, 128
        $region72: #{tpu_custom_call.1} parent=67 // pred_fallthru
          _
      $region68: #{tpu_custom_call.1} parent=5 // pred_fallthru
        _
    $region6: #{tpu_custom_call.1} parent=1 // loop_footer
      %s25 = sadd.s32 1, %s21
    $region7: #{tpu_custom_call.1} parent=1 // loop_footer_branch
      %20 = sbr.rel target = $region3
    $region8: #{tpu_custom_call.1} parent=1 // loop_exit
      _
    %616 = vsyncpa [#allocation3], 1
    %s617 = scalar_lea.sflag [#allocation3], 1
    %618 = vsyncpa %s617, 1
    %619 = vsyncpa [#allocation6], 1
    %s620 = scalar_lea.sflag [#allocation6], 1
    %621 = vsyncpa %s620, 1
    %622 = vsyncpa [#allocation9], 1
    %623 = vsyncpa [#allocation4], 1
    %s624 = scalar_lea.sflag [#allocation4], 1
    %625 = vsyncpa %s624, 1

</llo_original>
